<compile_context>
chip_gen: v6e
topology: v6e:2x2x1
jax: 0.10.0
libtpu: 0.0.40
codegen_flags: <defaults>
</compile_context>

<pallas_src>
import functools

import jax
import jax.numpy as jnp
from jax import lax
from jax.experimental import pallas as pl
from jax.experimental.pallas import tpu as pltpu


def _median_of_window(vals):
    """Lower median of a list of equally-shaped arrays via a min/max network."""
    n = len(vals)
    m = (n - 1) // 2            # torch.median returns the lower median
    v = list(vals)

    def ce(i, j):               # compare-exchange: v[i] <= v[j] afterwards
        a, b = v[i], v[j]
        v[i] = jnp.minimum(a, b)
        v[j] = jnp.maximum(a, b)

    if n == 9:
        # Paeth/Devillard median-of-9: 19 compare-exchanges. Legs whose
        # outputs never reach v[4] are dead code and eliminated by the
        # compiler, leaving ~30 VPU min/max ops.
        for i, j in ((1, 2), (4, 5), (7, 8), (0, 1), (3, 4), (6, 7),
                     (1, 2), (4, 5), (7, 8), (0, 3), (5, 8), (4, 7),
                     (3, 6), (1, 4), (2, 5), (4, 7), (4, 2), (6, 4), (4, 2)):
            ce(i, j)
        return v[4]

    # Generic (odd) window: bubble network pruned to the n-m passes that are
    # sufficient to finalize position m (the lower median).
    for p in range(n - m):
        for j in range(n - 1 - p):
            ce(j, j + 1)
    return v[m]


def _median_blur_kernel(xp_ref, out_ref, *, kh, kw, sh):
    # xp_ref : (BLK, H + kh - 1, Wout + kw - 1)   zero-padded images
    # out_ref: (BLK, H, Wout)                     Wout is a multiple of 128
    H = out_ref.shape[1]
    Wout = out_ref.shape[2]
    n_strips = H // sh

    def strip(s, carry):
        row = pl.multiple_of(s * sh, sh)
        xs = xp_ref[:, pl.ds(row, sh + kh - 1), :]
        # kh*kw shifted views of the strip; the small lane shifts lower to
        # XLU rotates/copies, which are free relative to the VALU-bound
        # min/max network.
        vals = [xs[:, di:di + sh, dj:dj + Wout]
                for di in range(kh) for dj in range(kw)]
        med = _median_of_window(vals)
        out_ref[:, pl.ds(row, sh), :] = med.astype(out_ref.dtype)
        return carry

    # fori_loop (not a Python for) bounds live ranges; unroll short loops so
    # the scheduler sees the whole body.
    lax.fori_loop(0, n_strips, strip, 0, unroll=(n_strips <= 4))


def _round_up(x, m):
    return (x + m - 1) // m * m


def _pick_blk(n_imgs, per_img_block_bytes, per_img_strip_bytes):
    """Largest divisor of n_imgs within the VMEM / megacore budget."""
    # ~6 MiB of block data per grid step -> ~12 MiB double-buffered, safely
    # under the 48 MiB vmem_limit on all of v5e / v6e / v7x (64 MiB physical).
    cap = max(1, (6 << 20) // max(per_img_block_bytes, 1))
    # Keep the in-kernel strip working set (kh*kw live views + temps) modest.
    cap = min(cap, max(1, (2 << 20) // max(per_img_strip_bytes, 1)))
    if n_imgs >= 2:
        cap = min(cap, n_imgs // 2)      # grid length >= 2 (v7x has 2 TCs)
    blk = 1
    for d in range(1, n_imgs + 1):
        if n_imgs % d == 0 and d <= cap:
            blk = d
    return blk


def median_blur(x, kernel_size=(3, 3)):
    """x: (B, C, H, W) -> (B, C, H, W); median filter with conv2d zero pad."""
    assert x.ndim == 4, "expected BxCxHxW"
    kh, kw = kernel_size
    assert kh % 2 == 1 and kw % 2 == 1, "odd kernel sizes only (kornia semantics)"
    ph, pw = (kh - 1) // 2, (kw - 1) // 2
    B, C, H, W = x.shape
    n_imgs = B * C

    # Lane-dense output width; one fused pad covers the zero halo AND the
    # pad-to-128-lanes (single extra HBM materialization instead of two).
    Wout = _round_up(W, 128)
    Hp = H + kh - 1
    Wp = Wout + kw - 1
    x_pad = jnp.pad(x.reshape(n_imgs, H, W),
                    ((0, 0), (ph, Hp - H - ph), (pw, Wp - W - pw)))

    sh = 8 if (H % 8 == 0 and H > 8) else H          # sublane strip height
    itemsize = jnp.dtype(x.dtype).itemsize
    per_img_block = (Hp * Wp + H * Wout) * itemsize
    per_img_strip = (kh * kw + 2) * sh * Wout * itemsize
    blk = _pick_blk(n_imgs, per_img_block, per_img_strip)

    kernel = functools.partial(_median_blur_kernel, kh=kh, kw=kw, sh=sh)

    out = pl.pallas_call(
        kernel,
        out_shape=jax.ShapeDtypeStruct((n_imgs, H, Wout), x.dtype),
        grid_spec=pltpu.PrefetchScalarGridSpec(
            num_scalar_prefetch=0,
            grid=(n_imgs // blk,),
            # Last two block dims equal the full array dims -> always legal;
            # output last dim is a multiple of 128 -> unmasked vst.
            in_specs=[pl.BlockSpec((blk, Hp, Wp), lambda i: (i, 0, 0))],
            out_specs=pl.BlockSpec((blk, H, Wout), lambda i: (i, 0, 0)),
        ),
        compiler_params=pltpu.CompilerParams(
            dimension_semantics=("parallel",),
            vmem_limit_bytes=48 * 1024 * 1024),
    )(x_pad)

    # Drop the lane-pad columns and restore (B, C, H, W).
    return out[:, :, :W].reshape(B, C, H, W)


def _median_blur_ref(x, kernel_size=(3, 3)):
    """Pure-JAX reference (mirrors the PyTorch module semantics)."""
    kh, kw = kernel_size
    ph, pw = (kh - 1) // 2, (kw - 1) // 2
    B, C, H, W = x.shape
    xp = jnp.pad(x, ((0, 0), (0, 0), (ph, ph), (pw, pw)))
    patches = jnp.stack(
        [xp[:, :, di:di + H, dj:dj + W] for di in range(kh) for dj in range(kw)],
        axis=2)  # (B, C, kh*kw, H, W)
    srt = jnp.sort(patches, axis=2)
    return srt[:, :, (kh * kw - 1) // 2]  # lower median (== torch.median for odd)


if __name__ == "__main__":
    key = jax.random.PRNGKey(0)
    x = jax.random.uniform(key, (2, 4, 16, 16), dtype=jnp.float32)

    y = median_blur(x, (3, 3))
    y = jax.block_until_ready(y)

    y_ref = _median_blur_ref(x, (3, 3))
    assert y.shape == (2, 4, 16, 16)
    assert jnp.allclose(y, y_ref, atol=1e-6), "mismatch vs reference"

    print("KERNEL_OK")
</pallas_src>

<mosaic_0001>
module attributes {stable_mosaic.version = 11 : i64} {
  func.func @_median_blur_kernel(%arg0: i32, %arg1: memref<4x18x130xf32, #tpu.memory_space<vmem>>, %arg2: memref<4x16x128xf32, #tpu.memory_space<vmem>>) attributes {dimension_semantics = [#tpu.dimension_semantics<parallel>], iteration_bounds = array<i64: 2>, scalar_prefetch = 0 : i64, scratch_operands = 0 : i64, tpu.core_type = #tpu.core_type<tc>, window_params = [{transform_indices = @transform_0, window_bounds = array<i64: 4, 18, 130>}, {transform_indices = @transform_1, window_bounds = array<i64: 4, 16, 128>}]} {
    %c0_i32 = arith.constant 0 : i32
    %c8_i32 = arith.constant 8 : i32
    %0 = arith.muli %c0_i32, %c8_i32 : i32
    %1 = tpu.assume_multiple %0, 8 : i32
    %c0 = arith.constant 0 : index
    %2 = arith.index_cast %1 : i32 to index
    %c0_0 = arith.constant 0 : index
    %3 = vector.load %arg1[%c0, %2, %c0_0] : memref<4x18x130xf32, #tpu.memory_space<vmem>>, vector<4x10x130xf32>
    %4 = vector.extract_strided_slice %3 {offsets = [0, 0, 0], sizes = [4, 8, 128], strides = [1, 1, 1]} : vector<4x10x130xf32> to vector<4x8x128xf32>
    %5 = vector.extract_strided_slice %3 {offsets = [0, 0, 1], sizes = [4, 8, 128], strides = [1, 1, 1]} : vector<4x10x130xf32> to vector<4x8x128xf32>
    %6 = vector.extract_strided_slice %3 {offsets = [0, 0, 2], sizes = [4, 8, 128], strides = [1, 1, 1]} : vector<4x10x130xf32> to vector<4x8x128xf32>
    %7 = vector.extract_strided_slice %3 {offsets = [0, 1, 0], sizes = [4, 8, 128], strides = [1, 1, 1]} : vector<4x10x130xf32> to vector<4x8x128xf32>
    %8 = vector.extract_strided_slice %3 {offsets = [0, 1, 1], sizes = [4, 8, 128], strides = [1, 1, 1]} : vector<4x10x130xf32> to vector<4x8x128xf32>
    %9 = vector.extract_strided_slice %3 {offsets = [0, 1, 2], sizes = [4, 8, 128], strides = [1, 1, 1]} : vector<4x10x130xf32> to vector<4x8x128xf32>
    %10 = vector.extract_strided_slice %3 {offsets = [0, 2, 0], sizes = [4, 8, 128], strides = [1, 1, 1]} : vector<4x10x130xf32> to vector<4x8x128xf32>
    %11 = vector.extract_strided_slice %3 {offsets = [0, 2, 1], sizes = [4, 8, 128], strides = [1, 1, 1]} : vector<4x10x130xf32> to vector<4x8x128xf32>
    %12 = vector.extract_strided_slice %3 {offsets = [0, 2, 2], sizes = [4, 8, 128], strides = [1, 1, 1]} : vector<4x10x130xf32> to vector<4x8x128xf32>
    %13 = arith.minimumf %5, %6 : vector<4x8x128xf32>
    %14 = arith.maximumf %5, %6 : vector<4x8x128xf32>
    %15 = arith.minimumf %8, %9 : vector<4x8x128xf32>
    %16 = arith.maximumf %8, %9 : vector<4x8x128xf32>
    %17 = arith.minimumf %11, %12 : vector<4x8x128xf32>
    %18 = arith.maximumf %11, %12 : vector<4x8x128xf32>
    %19 = arith.minimumf %4, %13 : vector<4x8x128xf32>
    %20 = arith.maximumf %4, %13 : vector<4x8x128xf32>
    %21 = arith.minimumf %7, %15 : vector<4x8x128xf32>
    %22 = arith.maximumf %7, %15 : vector<4x8x128xf32>
    %23 = arith.minimumf %10, %17 : vector<4x8x128xf32>
    %24 = arith.maximumf %10, %17 : vector<4x8x128xf32>
    %25 = arith.minimumf %20, %14 : vector<4x8x128xf32>
    %26 = arith.maximumf %20, %14 : vector<4x8x128xf32>
    %27 = arith.minimumf %22, %16 : vector<4x8x128xf32>
    %28 = arith.maximumf %22, %16 : vector<4x8x128xf32>
    %29 = arith.minimumf %24, %18 : vector<4x8x128xf32>
    %30 = arith.maximumf %24, %18 : vector<4x8x128xf32>
    %31 = arith.maximumf %19, %21 : vector<4x8x128xf32>
    %32 = arith.minimumf %28, %30 : vector<4x8x128xf32>
    %33 = arith.minimumf %27, %29 : vector<4x8x128xf32>
    %34 = arith.maximumf %27, %29 : vector<4x8x128xf32>
    %35 = arith.maximumf %31, %23 : vector<4x8x128xf32>
    %36 = arith.maximumf %25, %33 : vector<4x8x128xf32>
    %37 = arith.minimumf %26, %32 : vector<4x8x128xf32>
    %38 = arith.minimumf %36, %34 : vector<4x8x128xf32>
    %39 = arith.minimumf %38, %37 : vector<4x8x128xf32>
    %40 = arith.maximumf %38, %37 : vector<4x8x128xf32>
    %41 = arith.maximumf %35, %39 : vector<4x8x128xf32>
    %42 = arith.minimumf %41, %40 : vector<4x8x128xf32>
    %c0_1 = arith.constant 0 : index
    %43 = arith.index_cast %1 : i32 to index
    %c0_2 = arith.constant 0 : index
    %44 = vector.load %arg2[%c0_1, %43, %c0_2] : memref<4x16x128xf32, #tpu.memory_space<vmem>>, vector<4x8x128xf32>
    tpu.vector_store %arg2[%c0_1, %43, %c0_2], %42 {strides = array<i32>} : memref<4x16x128xf32, #tpu.memory_space<vmem>>, vector<4x8x128xf32>,
    %c1_i32 = arith.constant 1 : i32
    %c8_i32_3 = arith.constant 8 : i32
    %45 = arith.muli %c1_i32, %c8_i32_3 : i32
    %46 = tpu.assume_multiple %45, 8 : i32
    %c0_4 = arith.constant 0 : index
    %47 = arith.index_cast %46 : i32 to index
    %c0_5 = arith.constant 0 : index
    %48 = vector.load %arg1[%c0_4, %47, %c0_5] : memref<4x18x130xf32, #tpu.memory_space<vmem>>, vector<4x10x130xf32>
    %49 = vector.extract_strided_slice %48 {offsets = [0, 0, 0], sizes = [4, 8, 128], strides = [1, 1, 1]} : vector<4x10x130xf32> to vector<4x8x128xf32>
    %50 = vector.extract_strided_slice %48 {offsets = [0, 0, 1], sizes = [4, 8, 128], strides = [1, 1, 1]} : vector<4x10x130xf32> to vector<4x8x128xf32>
    %51 = vector.extract_strided_slice %48 {offsets = [0, 0, 2], sizes = [4, 8, 128], strides = [1, 1, 1]} : vector<4x10x130xf32> to vector<4x8x128xf32>
    %52 = vector.extract_strided_slice %48 {offsets = [0, 1, 0], sizes = [4, 8, 128], strides = [1, 1, 1]} : vector<4x10x130xf32> to vector<4x8x128xf32>
    %53 = vector.extract_strided_slice %48 {offsets = [0, 1, 1], sizes = [4, 8, 128], strides = [1, 1, 1]} : vector<4x10x130xf32> to vector<4x8x128xf32>
    %54 = vector.extract_strided_slice %48 {offsets = [0, 1, 2], sizes = [4, 8, 128], strides = [1, 1, 1]} : vector<4x10x130xf32> to vector<4x8x128xf32>
    %55 = vector.extract_strided_slice %48 {offsets = [0, 2, 0], sizes = [4, 8, 128], strides = [1, 1, 1]} : vector<4x10x130xf32> to vector<4x8x128xf32>
    %56 = vector.extract_strided_slice %48 {offsets = [0, 2, 1], sizes = [4, 8, 128], strides = [1, 1, 1]} : vector<4x10x130xf32> to vector<4x8x128xf32>
    %57 = vector.extract_strided_slice %48 {offsets = [0, 2, 2], sizes = [4, 8, 128], strides = [1, 1, 1]} : vector<4x10x130xf32> to vector<4x8x128xf32>
    %58 = arith.minimumf %50, %51 : vector<4x8x128xf32>
    %59 = arith.maximumf %50, %51 : vector<4x8x128xf32>
    %60 = arith.minimumf %53, %54 : vector<4x8x128xf32>
    %61 = arith.maximumf %53, %54 : vector<4x8x128xf32>
    %62 = arith.minimumf %56, %57 : vector<4x8x128xf32>
    %63 = arith.maximumf %56, %57 : vector<4x8x128xf32>
    %64 = arith.minimumf %49, %58 : vector<4x8x128xf32>
    %65 = arith.maximumf %49, %58 : vector<4x8x128xf32>
    %66 = arith.minimumf %52, %60 : vector<4x8x128xf32>
    %67 = arith.maximumf %52, %60 : vector<4x8x128xf32>
    %68 = arith.minimumf %55, %62 : vector<4x8x128xf32>
    %69 = arith.maximumf %55, %62 : vector<4x8x128xf32>
    %70 = arith.minimumf %65, %59 : vector<4x8x128xf32>
    %71 = arith.maximumf %65, %59 : vector<4x8x128xf32>
    %72 = arith.minimumf %67, %61 : vector<4x8x128xf32>
    %73 = arith.maximumf %67, %61 : vector<4x8x128xf32>
    %74 = arith.minimumf %69, %63 : vector<4x8x128xf32>
    %75 = arith.maximumf %69, %63 : vector<4x8x128xf32>
    %76 = arith.maximumf %64, %66 : vector<4x8x128xf32>
    %77 = arith.minimumf %73, %75 : vector<4x8x128xf32>
    %78 = arith.minimumf %72, %74 : vector<4x8x128xf32>
    %79 = arith.maximumf %72, %74 : vector<4x8x128xf32>
    %80 = arith.maximumf %76, %68 : vector<4x8x128xf32>
    %81 = arith.maximumf %70, %78 : vector<4x8x128xf32>
    %82 = arith.minimumf %71, %77 : vector<4x8x128xf32>
    %83 = arith.minimumf %81, %79 : vector<4x8x128xf32>
    %84 = arith.minimumf %83, %82 : vector<4x8x128xf32>
    %85 = arith.maximumf %83, %82 : vector<4x8x128xf32>
    %86 = arith.maximumf %80, %84 : vector<4x8x128xf32>
    %87 = arith.minimumf %86, %85 : vector<4x8x128xf32>
    %c0_6 = arith.constant 0 : index
    %88 = arith.index_cast %46 : i32 to index
    %c0_7 = arith.constant 0 : index
    %89 = vector.load %arg2[%c0_6, %88, %c0_7] : memref<4x16x128xf32, #tpu.memory_space<vmem>>, vector<4x8x128xf32>
    tpu.vector_store %arg2[%c0_6, %88, %c0_7], %87 {strides = array<i32>} : memref<4x16x128xf32, #tpu.memory_space<vmem>>, vector<4x8x128xf32>,
    %c2_i32 = arith.constant 2 : i32
    return
  }
  func.func @transform_0(%arg0: i32) -> (i32, i32, i32) {
    %c0_i32 = arith.constant 0 : i32
    %c0_i32_0 = arith.constant 0 : i32
    %c0_i32_1 = arith.constant 0 : i32
    return %arg0, %c0_i32, %c0_i32_0 : i32, i32, i32
  }
  func.func @transform_1(%arg0: i32) -> (i32, i32, i32) {
    %c0_i32 = arith.constant 0 : i32
    %c0_i32_0 = arith.constant 0 : i32
    %c0_i32_1 = arith.constant 0 : i32
    return %arg0, %c0_i32, %c0_i32_0 : i32, i32, i32
  }
}

</mosaic_0001>

<llo_original>
// kernel: tpu_custom_call.1
$region0: #{tpu_custom_call.1}
  #allocation0 [shape = 'u32[]', space=smem, size = 0x4, offset = 0x4, fixed_abs, tag = 'smem constant byte address 0x4 - core index']
  #allocation1 [shape = 'u32[144,128]{1,0:T(1,128)}', space=vmem, size = 0x12000, scoped, tag = 'internal scratch']
  %s0 = inlined_call_operand.vmem [shape: f32[8,18,130], index: 0, kind: input, shape index: {}]
  %s1 = inlined_call_operand.hbm [shape: f32[8,16,128], index: 1, kind: output, shape index: {}]
  %s2 = sld [smem:[#allocation0]]
  $region37: #{tpu_custom_call.1} parent=0
    _
  %s4 = ssub.s32 1, %s2
  %s5 = scalar_select 0, %s4, %s2
  $region1: #{tpu_custom_call.1} parent=0
    #allocation2 [shape = 'u8[65536]{0}', space=vmem, size = 0x10000, scoped, tag = 'output window, operand 0']
    #allocation3 [shape = 's32[2]{0}', space=sflag, size = 0x8, scoped, tag = 'scoped memory for tpu_custom_call.1']
    %6 = vsyncpa [#allocation3], 0
    %s7 = scalar_lea.sflag [#allocation3], 1
    %8 = vsyncpa %s7, 0
    loop: start=0, step=1, limit=4
    $region2: #{tpu_custom_call.1} parent=1 // loop_pre_header
      _
    $region3: #{tpu_custom_call.1} parent=1 // loop_header
      %s10 = sphi 0, %s14
      %p11 = scmp.ge.s32.totalorder %s10, 4
      %s20 = sphi 0, %s22
      %s23 = sphi 0, %s20
      %s24 = sphi 0, %s23
      %s40 = sphi 0, %s24
      %s46 = sphi 0, %s48
      %s49 = sphi 0, %s46
      %s50 = sphi 0, %s49
      %s66 = sphi 0, %s50
    $region4: #{tpu_custom_call.1} parent=1 // loop_header_branch
      %13 = sbr.rel (%p11) target = $region8
    $region5: #{tpu_custom_call.1} parent=1 // loop_body
      %s15 = ssub.s32 %s10, 1
      %s16 = ssub.s32 %s10, 2
      %s17 = sadd.s32 %s10, 1
      %s18 = ssub.s32 %s10, %s17
      %p19 = scmp.eq.s32.totalorder %s18, 0
      %s21 = sadd.s32 %s20, 1
      %s22 = scalar_select %p19, %s20, %s21
      %p25 = pneg %p19
      %p26 = scmp.eq.s32.totalorder %s10, 1
      %p27 = por %p25, %p26
      %p28 = scmp.ne.s32.totalorder %s20, %s23
      %p29 = scmp.eq.s32.totalorder %s10, 0
      %p30 = por %p28, %p29
      %p31 = scmp.ne.s32.totalorder %s20, %s23
      %p32 = scmp.eq.s32.totalorder %s15, 1
      %p33 = por %p31, %p32
      %p34 = scmp.ne.s32.totalorder %s23, %s24
      %p35 = scmp.eq.s32.totalorder %s15, 0
      %p36 = por %p34, %p35
      %p37 = scmp.ne.s32.totalorder %s23, %s24
      %p38 = scmp.eq.s32.totalorder %s16, 1
      %p39 = por %p37, %p38
      %p41 = scmp.ne.s32.totalorder %s24, %s40
      %p42 = scmp.eq.s32.totalorder %s16, 0
      %p43 = por %p41, %p42
      %s44 = ssub.s32 %s10, %s17
      %p45 = scmp.eq.s32.totalorder %s44, 0
      %s47 = sadd.s32 %s46, 1
      %s48 = scalar_select %p45, %s46, %s47
      %p51 = pneg %p45
      %p52 = scmp.eq.s32.totalorder %s10, 1
      %p53 = por %p51, %p52
      %p54 = scmp.ne.s32.totalorder %s46, %s49
      %p55 = scmp.eq.s32.totalorder %s10, 0
      %p56 = por %p54, %p55
      %p57 = scmp.ne.s32.totalorder %s46, %s49
      %p58 = scmp.eq.s32.totalorder %s15, 1
      %p59 = por %p57, %p58
      %p60 = scmp.ne.s32.totalorder %s49, %s50
      %p61 = scmp.eq.s32.totalorder %s15, 0
      %p62 = por %p60, %p61
      %p63 = scmp.ne.s32.totalorder %s49, %s50
      %p64 = scmp.eq.s32.totalorder %s16, 1
      %p65 = por %p63, %p64
      %p67 = scmp.ne.s32.totalorder %s50, %s66
      %p68 = scmp.eq.s32.totalorder %s16, 0
      %p69 = por %p67, %p68
      %p70 = scmp.le.s32.totalorder 1, %s10
      %p71 = scmp.lt.s32.totalorder %s10, 3
      %p72 = pnand %p70, %p71
      %p73 = pneg %p72
      // Predicated region
      $region9: #{tpu_custom_call.1} parent=5 // pred_check
        _
      $region10: #{tpu_custom_call.1} parent=5 // pred_check_branch
        %75 = sbr.rel (%p72) target = $region12
      $region11: #{tpu_custom_call.1} parent=5 // pred_region
        %s76 = ssub.s32 %s10, 1
      $region12: #{tpu_custom_call.1} parent=5 // pred_fallthru
        _
      %p77 = scmp.lt.s32.totalorder %s10, 2
      // Predicated region
      $region13: #{tpu_custom_call.1} parent=5 // pred_check
        %p78 = pneg %p77
      $region14: #{tpu_custom_call.1} parent=5 // pred_check_branch
        %80 = sbr.rel (%p78) target = $region16
      $region15: #{tpu_custom_call.1} parent=5 // pred_region
        // Predicated region
        $region17: #{tpu_custom_call.1} parent=15 // pred_check
          %p81 = pneg %p30
        $region18: #{tpu_custom_call.1} parent=15 // pred_check_branch
          %83 = sbr.rel (%p81) target = $region20
        $region19: #{tpu_custom_call.1} parent=15 // pred_region
          %s84 = smul.u32 4, %s10
          %p85 = scmp.lt.s32.totalorder %s84, 7
          %s86 = scalar_select %p85, %s84, 7
          %s87 = smul.addr %s86, 6
          %s88 = smul.addr %s87, 8
          %s89 = scalar_lea.vmem %s0, %s88
          %s90 = smul.u32 4, %s10
        $region20: #{tpu_custom_call.1} parent=15 // pred_fallthru
          _
      $region16: #{tpu_custom_call.1} parent=5 // pred_fallthru
        _
      %p91 = scmp.le.s32.totalorder 1, %s10
      %p92 = scmp.lt.s32.totalorder %s10, 3
      %p93 = pnand %p91, %p92
      %p94 = pneg %p93
      // Predicated region
      $region21: #{tpu_custom_call.1} parent=5 // pred_check
        _
      $region22: #{tpu_custom_call.1} parent=5 // pred_check_branch
        %96 = sbr.rel (%p93) target = $region24
      $region23: #{tpu_custom_call.1} parent=5 // pred_region
        %s97 = ssub.s32 %s10, 1
        %s98 = smul.u32 4, %s15
        %p99 = scmp.lt.s32.totalorder %s98, 7
        %s100 = scalar_select %p99, %s98, 7
        %s101 = smul.addr %s100, 6
        %s102 = smul.addr %s101, 8
        %s103 = scalar_lea.vmem %s0, %s102
        %p104 = pneg %p36
        %p105 = pneg %p33
        %p106 = pneg %p62
        %p107 = pneg %p59
        %s108 = sand.u32 %s49, 1
        %s109 = scalar_lea.sflag [#allocation3], %s108
        %s110 = sand.u32 %s49, 1
        %s111 = smul.addr %s110, 64
        %s112 = scalar_lea.vmem [#allocation2], %s111
        %s113 = smul.u32 4, %s15
        %p114 = scmp.lt.s32.totalorder %s113, 7
        %s115 = scalar_select %p114, %s113, 7
        %s116 = smul.addr %s115, 6
        %s117 = smul.addr %s116, 8
        %s118 = scalar_lea.vmem %s0, %s117
        %s119 = smul.u32 4, %s15
        %s120 = smul.u32 4, %s15
        %s121 = smul.u32 0, 2
        %s122 = smul.addr %s121, 8
        %s123 = scalar_lea.vmem %s118, %s122
        %v124 = vld [vmem:[%s123] sm:$0xff]
        %v125 = vld [vmem:[%s123 + $0x8] sm:$0xff]
        %v126 = vld [vmem:[%s123 + $0x10] sm:$0x3]
        %v127 = vld [vmem:[%s123 + $0x18] sm:$0x3]
        %v128 = vld [vmem:[%s123 + $0x30] sm:$0xff]
        %v129 = vld [vmem:[%s123 + $0x38] sm:$0xff]
        %v130 = vld [vmem:[%s123 + $0x40] sm:$0x3]
        %v131 = vld [vmem:[%s123 + $0x48] sm:$0x3]
        %v132 = vld [vmem:[%s123 + $0x60] sm:$0xff]
        %v133 = vld [vmem:[%s123 + $0x68] sm:$0xff]
        %v134 = vld [vmem:[%s123 + $0x70] sm:$0x3]
        %v135 = vld [vmem:[%s123 + $0x78] sm:$0x3]
        %v136 = vld [vmem:[%s123 + $0x90] sm:$0xff]
        %v137 = vld [vmem:[%s123 + $0x98] sm:$0xff]
        %v138 = vld [vmem:[%s123 + $0xa0] sm:$0x3]
        %v139 = vld [vmem:[%s123 + $0xa8] sm:$0x3]
        %148 = vrot.lane.b32.xlu0 %v124, 127
        %v149 = vpop.permute.xlu0 %148
        %150 = vrot.lane.b32.xlu0 %v125, 127
        %v151 = vpop.permute.xlu0 %150
        %152 = vrot.lane.b32.xlu0 %v128, 127
        %v153 = vpop.permute.xlu0 %152
        %154 = vrot.lane.b32.xlu0 %v129, 127
        %v155 = vpop.permute.xlu0 %154
        %156 = vrot.lane.b32.xlu0 %v132, 127
        %v157 = vpop.permute.xlu0 %156
        %158 = vrot.lane.b32.xlu0 %v133, 127
        %v159 = vpop.permute.xlu0 %158
        %160 = vrot.lane.b32.xlu0 %v136, 127
        %v161 = vpop.permute.xlu0 %160
        %162 = vrot.lane.b32.xlu0 %v137, 127
        %v163 = vpop.permute.xlu0 %162
        %vm164 = vcmask 1039360
        %v165 = vsel %vm164, %v149, %v151
        %v166 = vsel %vm164, %v153, %v155
        %v167 = vsel %vm164, %v157, %v159
        %v168 = vsel %vm164, %v161, %v163
        %v177 = vmin.f32 %v124, %v165
        %v178 = vmin.f32 %v125, %v151
        %v179 = vmin.f32 %v128, %v166
        %v180 = vmin.f32 %v129, %v155
        %v181 = vmin.f32 %v132, %v167
        %v182 = vmin.f32 %v133, %v159
        %v183 = vmin.f32 %v136, %v168
        %v184 = vmin.f32 %v137, %v163
        %v185 = vmax.f32 %v124, %v165
        %v186 = vmax.f32 %v125, %v151
        %v187 = vmax.f32 %v128, %v166
        %v188 = vmax.f32 %v129, %v155
        %v189 = vmax.f32 %v132, %v167
        %v190 = vmax.f32 %v133, %v159
        %v191 = vmax.f32 %v136, %v168
        %v192 = vmax.f32 %v137, %v163
        %201 = vrot.lane.b32.xlu0 %v126, 127
        %v202 = vpop.permute.xlu0 %201
        %203 = vrot.lane.b32.xlu0 %v127, 127
        %v204 = vpop.permute.xlu0 %203
        %205 = vrot.lane.b32.xlu0 %v130, 127
        %v206 = vpop.permute.xlu0 %205
        %207 = vrot.lane.b32.xlu0 %v131, 127
        %v208 = vpop.permute.xlu0 %207
        %209 = vrot.lane.b32.xlu0 %v134, 127
        %v210 = vpop.permute.xlu0 %209
        %211 = vrot.lane.b32.xlu0 %v135, 127
        %v212 = vpop.permute.xlu0 %211
        %213 = vrot.lane.b32.xlu0 %v138, 127
        %v214 = vpop.permute.xlu0 %213
        %215 = vrot.lane.b32.xlu0 %v139, 127
        %v216 = vpop.permute.xlu0 %215
        %v217 = vsel %vm164, %v202, %v204
        %v218 = vsel %vm164, %v206, %v208
        %v219 = vsel %vm164, %v210, %v212
        %v220 = vsel %vm164, %v214, %v216
        %v229 = vmin.f32 %v126, %v217
        %v230 = vmin.f32 %v127, %v204
        %v231 = vmin.f32 %v130, %v218
        %v232 = vmin.f32 %v131, %v208
        %v233 = vmin.f32 %v134, %v219
        %v234 = vmin.f32 %v135, %v212
        %v235 = vmin.f32 %v138, %v220
        %v236 = vmin.f32 %v139, %v216
        %v237 = vmax.f32 %v126, %v217
        %v238 = vmax.f32 %v127, %v204
        %v239 = vmax.f32 %v130, %v218
        %v240 = vmax.f32 %v131, %v208
        %v241 = vmax.f32 %v134, %v219
        %v242 = vmax.f32 %v135, %v212
        %v243 = vmax.f32 %v138, %v220
        %v244 = vmax.f32 %v139, %v216
        %253 = vrot.lane.b32.xlu0 %v177, 127
        %v254 = vpop.permute.xlu0 %253
        %255 = vrot.lane.b32.xlu0 %v178, 127
        %v256 = vpop.permute.xlu0 %255
        %257 = vrot.lane.b32.xlu0 %v179, 127
        %v258 = vpop.permute.xlu0 %257
        %259 = vrot.lane.b32.xlu0 %v180, 127
        %v260 = vpop.permute.xlu0 %259
        %261 = vrot.lane.b32.xlu0 %v181, 127
        %v262 = vpop.permute.xlu0 %261
        %263 = vrot.lane.b32.xlu0 %v182, 127
        %v264 = vpop.permute.xlu0 %263
        %265 = vrot.lane.b32.xlu0 %v183, 127
        %v266 = vpop.permute.xlu0 %265
        %267 = vrot.lane.b32.xlu0 %v184, 127
        %v268 = vpop.permute.xlu0 %267
        %v269 = vsel %vm164, %v254, %v256
        %v270 = vsel %vm164, %v258, %v260
        %v271 = vsel %vm164, %v262, %v264
        %v272 = vsel %vm164, %v266, %v268
        %v277 = vmin.f32 %v124, %v269
        %v278 = vmin.f32 %v128, %v270
        %v279 = vmin.f32 %v132, %v271
        %v280 = vmin.f32 %v136, %v272
        %v281 = vmax.f32 %v124, %v269
        %v282 = vmax.f32 %v128, %v270
        %v283 = vmax.f32 %v132, %v271
        %v284 = vmax.f32 %v136, %v272
        %293 = vrot.lane.b32.xlu0 %v229, 127
        %v294 = vpop.permute.xlu0 %293
        %295 = vrot.lane.b32.xlu0 %v230, 127
        %v296 = vpop.permute.xlu0 %295
        %297 = vrot.lane.b32.xlu0 %v231, 127
        %v298 = vpop.permute.xlu0 %297
        %299 = vrot.lane.b32.xlu0 %v232, 127
        %v300 = vpop.permute.xlu0 %299
        %301 = vrot.lane.b32.xlu0 %v233, 127
        %v302 = vpop.permute.xlu0 %301
        %303 = vrot.lane.b32.xlu0 %v234, 127
        %v304 = vpop.permute.xlu0 %303
        %305 = vrot.lane.b32.xlu0 %v235, 127
        %v306 = vpop.permute.xlu0 %305
        %307 = vrot.lane.b32.xlu0 %v236, 127
        %v308 = vpop.permute.xlu0 %307
        %v309 = vsel %vm164, %v294, %v296
        %v310 = vsel %vm164, %v298, %v300
        %v311 = vsel %vm164, %v302, %v304
        %v312 = vsel %vm164, %v306, %v308
        %v317 = vmin.f32 %v126, %v309
        %v318 = vmin.f32 %v130, %v310
        %v319 = vmin.f32 %v134, %v311
        %v320 = vmin.f32 %v138, %v312
        %v321 = vmax.f32 %v126, %v309
        %v322 = vmax.f32 %v130, %v310
        %v323 = vmax.f32 %v134, %v311
        %v324 = vmax.f32 %v138, %v312
        %333 = vrot.lane.b32.xlu0 %v185, 127
        %v334 = vpop.permute.xlu0 %333
        %335 = vrot.lane.b32.xlu0 %v186, 127
        %v336 = vpop.permute.xlu0 %335
        %337 = vrot.lane.b32.xlu0 %v187, 127
        %v338 = vpop.permute.xlu0 %337
        %339 = vrot.lane.b32.xlu0 %v188, 127
        %v340 = vpop.permute.xlu0 %339
        %341 = vrot.lane.b32.xlu0 %v189, 127
        %v342 = vpop.permute.xlu0 %341
        %343 = vrot.lane.b32.xlu0 %v190, 127
        %v344 = vpop.permute.xlu0 %343
        %345 = vrot.lane.b32.xlu0 %v191, 127
        %v346 = vpop.permute.xlu0 %345
        %347 = vrot.lane.b32.xlu0 %v192, 127
        %v348 = vpop.permute.xlu0 %347
        %v349 = vsel %vm164, %v334, %v336
        %v350 = vsel %vm164, %v338, %v340
        %v351 = vsel %vm164, %v342, %v344
        %v352 = vsel %vm164, %v346, %v348
        %v357 = vmin.f32 %v281, %v349
        %v358 = vmin.f32 %v282, %v350
        %v359 = vmin.f32 %v283, %v351
        %v360 = vmin.f32 %v284, %v352
        %v361 = vmax.f32 %v281, %v349
        %v362 = vmax.f32 %v282, %v350
        %v363 = vmax.f32 %v283, %v351
        %v364 = vmax.f32 %v284, %v352
        %373 = vrot.lane.b32.xlu0 %v237, 127
        %v374 = vpop.permute.xlu0 %373
        %375 = vrot.lane.b32.xlu0 %v238, 127
        %v376 = vpop.permute.xlu0 %375
        %377 = vrot.lane.b32.xlu0 %v239, 127
        %v378 = vpop.permute.xlu0 %377
        %379 = vrot.lane.b32.xlu0 %v240, 127
        %v380 = vpop.permute.xlu0 %379
        %381 = vrot.lane.b32.xlu0 %v241, 127
        %v382 = vpop.permute.xlu0 %381
        %383 = vrot.lane.b32.xlu0 %v242, 127
        %v384 = vpop.permute.xlu0 %383
        %385 = vrot.lane.b32.xlu0 %v243, 127
        %v386 = vpop.permute.xlu0 %385
        %387 = vrot.lane.b32.xlu0 %v244, 127
        %v388 = vpop.permute.xlu0 %387
        %v389 = vsel %vm164, %v374, %v376
        %v390 = vsel %vm164, %v378, %v380
        %v391 = vsel %vm164, %v382, %v384
        %v392 = vsel %vm164, %v386, %v388
        %v397 = vmin.f32 %v321, %v389
        %v398 = vmin.f32 %v322, %v390
        %v399 = vmin.f32 %v323, %v391
        %v400 = vmin.f32 %v324, %v392
        %v401 = vmax.f32 %v321, %v389
        %v402 = vmax.f32 %v322, %v390
        %v403 = vmax.f32 %v323, %v391
        %v404 = vmax.f32 %v324, %v392
        %vm413 = vcmask 1046528
        %v414 = vrot.slane %v277, 1
        %v415 = vrot.slane %v317, 1
        %v416 = vsel %vm413, %v414, %v415
        %v417 = vrot.slane %v278, 1
        %v418 = vrot.slane %v318, 1
        %v419 = vsel %vm413, %v417, %v418
        %v420 = vrot.slane %v279, 1
        %v421 = vrot.slane %v319, 1
        %v422 = vsel %vm413, %v420, %v421
        %v423 = vrot.slane %v280, 1
        %v424 = vrot.slane %v320, 1
        %v425 = vsel %vm413, %v423, %v424
        %v430 = vmax.f32 %v277, %v416
        %v431 = vmax.f32 %v278, %v419
        %v432 = vmax.f32 %v279, %v422
        %v433 = vmax.f32 %v280, %v425
        %v442 = vrot.slane %v361, 1
        %v443 = vrot.slane %v401, 1
        %v444 = vsel %vm413, %v442, %v443
        %v445 = vrot.slane %v362, 1
        %v446 = vrot.slane %v402, 1
        %v447 = vsel %vm413, %v445, %v446
        %v448 = vrot.slane %v363, 1
        %v449 = vrot.slane %v403, 1
        %v450 = vsel %vm413, %v448, %v449
        %v451 = vrot.slane %v364, 1
        %v452 = vrot.slane %v404, 1
        %v453 = vsel %vm413, %v451, %v452
        %v462 = vmin.f32 %v361, %v444
        %v463 = vmin.f32 %v401, %v443
        %v464 = vmin.f32 %v362, %v447
        %v465 = vmin.f32 %v402, %v446
        %v466 = vmin.f32 %v363, %v450
        %v467 = vmin.f32 %v403, %v449
        %v468 = vmin.f32 %v364, %v453
        %v469 = vmin.f32 %v404, %v452
        %v478 = vrot.slane %v357, 1
        %v479 = vrot.slane %v397, 1
        %v480 = vsel %vm413, %v478, %v479
        %v481 = vrot.slane %v358, 1
        %v482 = vrot.slane %v398, 1
        %v483 = vsel %vm413, %v481, %v482
        %v484 = vrot.slane %v359, 1
        %v485 = vrot.slane %v399, 1
        %v486 = vsel %vm413, %v484, %v485
        %v487 = vrot.slane %v360, 1
        %v488 = vrot.slane %v400, 1
        %v489 = vsel %vm413, %v487, %v488
        %v498 = vmin.f32 %v357, %v480
        %v499 = vmin.f32 %v397, %v479
        %v500 = vmin.f32 %v358, %v483
        %v501 = vmin.f32 %v398, %v482
        %v502 = vmin.f32 %v359, %v486
        %v503 = vmin.f32 %v399, %v485
        %v504 = vmin.f32 %v360, %v489
        %v505 = vmin.f32 %v400, %v488
        %v506 = vmax.f32 %v357, %v480
        %v507 = vmax.f32 %v397, %v479
        %v508 = vmax.f32 %v358, %v483
        %v509 = vmax.f32 %v398, %v482
        %v510 = vmax.f32 %v359, %v486
        %v511 = vmax.f32 %v399, %v485
        %v512 = vmax.f32 %v360, %v489
        %v513 = vmax.f32 %v400, %v488
        %vm514 = vcmask 1045504
        %v515 = vrot.slane %v277, 2
        %v516 = vrot.slane %v317, 2
        %v517 = vsel %vm514, %v515, %v516
        %v518 = vrot.slane %v278, 2
        %v519 = vrot.slane %v318, 2
        %v520 = vsel %vm514, %v518, %v519
        %v521 = vrot.slane %v279, 2
        %v522 = vrot.slane %v319, 2
        %v523 = vsel %vm514, %v521, %v522
        %v524 = vrot.slane %v280, 2
        %v525 = vrot.slane %v320, 2
        %v526 = vsel %vm514, %v524, %v525
        %v531 = vmax.f32 %v430, %v517
        %v532 = vmax.f32 %v431, %v520
        %v533 = vmax.f32 %v432, %v523
        %v534 = vmax.f32 %v433, %v526
        %v543 = vrot.slane %v498, 1
        %v544 = vrot.slane %v499, 1
        %v545 = vsel %vm413, %v543, %v544
        %v546 = vrot.slane %v500, 1
        %v547 = vrot.slane %v501, 1
        %v548 = vsel %vm413, %v546, %v547
        %v549 = vrot.slane %v502, 1
        %v550 = vrot.slane %v503, 1
        %v551 = vsel %vm413, %v549, %v550
        %v552 = vrot.slane %v504, 1
        %v553 = vrot.slane %v505, 1
        %v554 = vsel %vm413, %v552, %v553
        %v559 = vmax.f32 %v357, %v545
        %v560 = vmax.f32 %v358, %v548
        %v561 = vmax.f32 %v359, %v551
        %v562 = vmax.f32 %v360, %v554
        %v571 = vrot.slane %v462, 1
        %v572 = vrot.slane %v463, 1
        %v573 = vsel %vm413, %v571, %v572
        %v574 = vrot.slane %v464, 1
        %v575 = vrot.slane %v465, 1
        %v576 = vsel %vm413, %v574, %v575
        %v577 = vrot.slane %v466, 1
        %v578 = vrot.slane %v467, 1
        %v579 = vsel %vm413, %v577, %v578
        %v580 = vrot.slane %v468, 1
        %v581 = vrot.slane %v469, 1
        %v582 = vsel %vm413, %v580, %v581
        %v587 = vmin.f32 %v361, %v573
        %v588 = vmin.f32 %v362, %v576
        %v589 = vmin.f32 %v363, %v579
        %v590 = vmin.f32 %v364, %v582
        %v599 = vrot.slane %v506, 1
        %v600 = vrot.slane %v507, 1
        %v601 = vsel %vm413, %v599, %v600
        %v602 = vrot.slane %v508, 1
        %v603 = vrot.slane %v509, 1
        %v604 = vsel %vm413, %v602, %v603
        %v605 = vrot.slane %v510, 1
        %v606 = vrot.slane %v511, 1
        %v607 = vsel %vm413, %v605, %v606
        %v608 = vrot.slane %v512, 1
        %v609 = vrot.slane %v513, 1
        %v610 = vsel %vm413, %v608, %v609
        %v615 = vmin.f32 %v559, %v601
        %v616 = vmin.f32 %v560, %v604
        %v617 = vmin.f32 %v561, %v607
        %v618 = vmin.f32 %v562, %v610
        %v619 = vmin.f32 %v615, %v587
        %v620 = vmin.f32 %v616, %v588
        %v621 = vmin.f32 %v617, %v589
        %v622 = vmin.f32 %v618, %v590
        %v623 = vmax.f32 %v615, %v587
        %v624 = vmax.f32 %v616, %v588
        %v625 = vmax.f32 %v617, %v589
        %v626 = vmax.f32 %v618, %v590
        %v627 = vmax.f32 %v531, %v619
        %v628 = vmax.f32 %v532, %v620
        %v629 = vmax.f32 %v533, %v621
        %v630 = vmax.f32 %v534, %v622
        %v631 = vmin.f32 %v627, %v623
        %v632 = vmin.f32 %v628, %v624
        %v633 = vmin.f32 %v629, %v625
        %v634 = vmin.f32 %v630, %v626
        %635 = vst [vmem:[%s112] sm:$0xff] %v631
        %636 = vst [vmem:[%s112 + $0x10] sm:$0xff] %v632
        %637 = vst [vmem:[%s112 + $0x20] sm:$0xff] %v633
        %638 = vst [vmem:[%s112 + $0x30] sm:$0xff] %v634
        %s639 = smul.u32 1, 2
        %s640 = smul.addr %s639, 8
        %s641 = scalar_lea.vmem %s118, %s640
        %v642 = vld [vmem:[%s641] sm:$0xff]
        %v643 = vld [vmem:[%s641 + $0x8] sm:$0xff]
        %v644 = vld [vmem:[%s641 + $0x10] sm:$0x3]
        %v645 = vld [vmem:[%s641 + $0x18] sm:$0x3]
        %v646 = vld [vmem:[%s641 + $0x30] sm:$0xff]
        %v647 = vld [vmem:[%s641 + $0x38] sm:$0xff]
        %v648 = vld [vmem:[%s641 + $0x40] sm:$0x3]
        %v649 = vld [vmem:[%s641 + $0x48] sm:$0x3]
        %v650 = vld [vmem:[%s641 + $0x60] sm:$0xff]
        %v651 = vld [vmem:[%s641 + $0x68] sm:$0xff]
        %v652 = vld [vmem:[%s641 + $0x70] sm:$0x3]
        %v653 = vld [vmem:[%s641 + $0x78] sm:$0x3]
        %v654 = vld [vmem:[%s641 + $0x90] sm:$0xff]
        %v655 = vld [vmem:[%s641 + $0x98] sm:$0xff]
        %v656 = vld [vmem:[%s641 + $0xa0] sm:$0x3]
        %v657 = vld [vmem:[%s641 + $0xa8] sm:$0x3]
        %666 = vrot.lane.b32.xlu0 %v642, 127
        %v667 = vpop.permute.xlu0 %666
        %668 = vrot.lane.b32.xlu0 %v643, 127
        %v669 = vpop.permute.xlu0 %668
        %670 = vrot.lane.b32.xlu0 %v646, 127
        %v671 = vpop.permute.xlu0 %670
        %672 = vrot.lane.b32.xlu0 %v647, 127
        %v673 = vpop.permute.xlu0 %672
        %674 = vrot.lane.b32.xlu0 %v650, 127
        %v675 = vpop.permute.xlu0 %674
        %676 = vrot.lane.b32.xlu0 %v651, 127
        %v677 = vpop.permute.xlu0 %676
        %678 = vrot.lane.b32.xlu0 %v654, 127
        %v679 = vpop.permute.xlu0 %678
        %680 = vrot.lane.b32.xlu0 %v655, 127
        %v681 = vpop.permute.xlu0 %680
        %v682 = vsel %vm164, %v667, %v669
        %v683 = vsel %vm164, %v671, %v673
        %v684 = vsel %vm164, %v675, %v677
        %v685 = vsel %vm164, %v679, %v681
        %v694 = vmin.f32 %v642, %v682
        %v695 = vmin.f32 %v643, %v669
        %v696 = vmin.f32 %v646, %v683
        %v697 = vmin.f32 %v647, %v673
        %v698 = vmin.f32 %v650, %v684
        %v699 = vmin.f32 %v651, %v677
        %v700 = vmin.f32 %v654, %v685
        %v701 = vmin.f32 %v655, %v681
        %v702 = vmax.f32 %v642, %v682
        %v703 = vmax.f32 %v643, %v669
        %v704 = vmax.f32 %v646, %v683
        %v705 = vmax.f32 %v647, %v673
        %v706 = vmax.f32 %v650, %v684
        %v707 = vmax.f32 %v651, %v677
        %v708 = vmax.f32 %v654, %v685
        %v709 = vmax.f32 %v655, %v681
        %718 = vrot.lane.b32.xlu0 %v644, 127
        %v719 = vpop.permute.xlu0 %718
        %720 = vrot.lane.b32.xlu0 %v645, 127
        %v721 = vpop.permute.xlu0 %720
        %722 = vrot.lane.b32.xlu0 %v648, 127
        %v723 = vpop.permute.xlu0 %722
        %724 = vrot.lane.b32.xlu0 %v649, 127
        %v725 = vpop.permute.xlu0 %724
        %726 = vrot.lane.b32.xlu0 %v652, 127
        %v727 = vpop.permute.xlu0 %726
        %728 = vrot.lane.b32.xlu0 %v653, 127
        %v729 = vpop.permute.xlu0 %728
        %730 = vrot.lane.b32.xlu0 %v656, 127
        %v731 = vpop.permute.xlu0 %730
        %732 = vrot.lane.b32.xlu0 %v657, 127
        %v733 = vpop.permute.xlu0 %732
        %v734 = vsel %vm164, %v719, %v721
        %v735 = vsel %vm164, %v723, %v725
        %v736 = vsel %vm164, %v727, %v729
        %v737 = vsel %vm164, %v731, %v733
        %v746 = vmin.f32 %v644, %v734
        %v747 = vmin.f32 %v645, %v721
        %v748 = vmin.f32 %v648, %v735
        %v749 = vmin.f32 %v649, %v725
        %v750 = vmin.f32 %v652, %v736
        %v751 = vmin.f32 %v653, %v729
        %v752 = vmin.f32 %v656, %v737
        %v753 = vmin.f32 %v657, %v733
        %v754 = vmax.f32 %v644, %v734
        %v755 = vmax.f32 %v645, %v721
        %v756 = vmax.f32 %v648, %v735
        %v757 = vmax.f32 %v649, %v725
        %v758 = vmax.f32 %v652, %v736
        %v759 = vmax.f32 %v653, %v729
        %v760 = vmax.f32 %v656, %v737
        %v761 = vmax.f32 %v657, %v733
        %770 = vrot.lane.b32.xlu0 %v694, 127
        %v771 = vpop.permute.xlu0 %770
        %772 = vrot.lane.b32.xlu0 %v695, 127
        %v773 = vpop.permute.xlu0 %772
        %774 = vrot.lane.b32.xlu0 %v696, 127
        %v775 = vpop.permute.xlu0 %774
        %776 = vrot.lane.b32.xlu0 %v697, 127
        %v777 = vpop.permute.xlu0 %776
        %778 = vrot.lane.b32.xlu0 %v698, 127
        %v779 = vpop.permute.xlu0 %778
        %780 = vrot.lane.b32.xlu0 %v699, 127
        %v781 = vpop.permute.xlu0 %780
        %782 = vrot.lane.b32.xlu0 %v700, 127
        %v783 = vpop.permute.xlu0 %782
        %784 = vrot.lane.b32.xlu0 %v701, 127
        %v785 = vpop.permute.xlu0 %784
        %v786 = vsel %vm164, %v771, %v773
        %v787 = vsel %vm164, %v775, %v777
        %v788 = vsel %vm164, %v779, %v781
        %v789 = vsel %vm164, %v783, %v785
        %v794 = vmin.f32 %v642, %v786
        %v795 = vmin.f32 %v646, %v787
        %v796 = vmin.f32 %v650, %v788
        %v797 = vmin.f32 %v654, %v789
        %v798 = vmax.f32 %v642, %v786
        %v799 = vmax.f32 %v646, %v787
        %v800 = vmax.f32 %v650, %v788
        %v801 = vmax.f32 %v654, %v789
        %810 = vrot.lane.b32.xlu0 %v746, 127
        %v811 = vpop.permute.xlu0 %810
        %812 = vrot.lane.b32.xlu0 %v747, 127
        %v813 = vpop.permute.xlu0 %812
        %814 = vrot.lane.b32.xlu0 %v748, 127
        %v815 = vpop.permute.xlu0 %814
        %816 = vrot.lane.b32.xlu0 %v749, 127
        %v817 = vpop.permute.xlu0 %816
        %818 = vrot.lane.b32.xlu0 %v750, 127
        %v819 = vpop.permute.xlu0 %818
        %820 = vrot.lane.b32.xlu0 %v751, 127
        %v821 = vpop.permute.xlu0 %820
        %822 = vrot.lane.b32.xlu0 %v752, 127
        %v823 = vpop.permute.xlu0 %822
        %824 = vrot.lane.b32.xlu0 %v753, 127
        %v825 = vpop.permute.xlu0 %824
        %v826 = vsel %vm164, %v811, %v813
        %v827 = vsel %vm164, %v815, %v817
        %v828 = vsel %vm164, %v819, %v821
        %v829 = vsel %vm164, %v823, %v825
        %v834 = vmin.f32 %v644, %v826
        %v835 = vmin.f32 %v648, %v827
        %v836 = vmin.f32 %v652, %v828
        %v837 = vmin.f32 %v656, %v829
        %v838 = vmax.f32 %v644, %v826
        %v839 = vmax.f32 %v648, %v827
        %v840 = vmax.f32 %v652, %v828
        %v841 = vmax.f32 %v656, %v829
        %850 = vrot.lane.b32.xlu0 %v702, 127
        %v851 = vpop.permute.xlu0 %850
        %852 = vrot.lane.b32.xlu0 %v703, 127
        %v853 = vpop.permute.xlu0 %852
        %854 = vrot.lane.b32.xlu0 %v704, 127
        %v855 = vpop.permute.xlu0 %854
        %856 = vrot.lane.b32.xlu0 %v705, 127
        %v857 = vpop.permute.xlu0 %856
        %858 = vrot.lane.b32.xlu0 %v706, 127
        %v859 = vpop.permute.xlu0 %858
        %860 = vrot.lane.b32.xlu0 %v707, 127
        %v861 = vpop.permute.xlu0 %860
        %862 = vrot.lane.b32.xlu0 %v708, 127
        %v863 = vpop.permute.xlu0 %862
        %864 = vrot.lane.b32.xlu0 %v709, 127
        %v865 = vpop.permute.xlu0 %864
        %v866 = vsel %vm164, %v851, %v853
        %v867 = vsel %vm164, %v855, %v857
        %v868 = vsel %vm164, %v859, %v861
        %v869 = vsel %vm164, %v863, %v865
        %v874 = vmin.f32 %v798, %v866
        %v875 = vmin.f32 %v799, %v867
        %v876 = vmin.f32 %v800, %v868
        %v877 = vmin.f32 %v801, %v869
        %v878 = vmax.f32 %v798, %v866
        %v879 = vmax.f32 %v799, %v867
        %v880 = vmax.f32 %v800, %v868
        %v881 = vmax.f32 %v801, %v869
        %890 = vrot.lane.b32.xlu0 %v754, 127
        %v891 = vpop.permute.xlu0 %890
        %892 = vrot.lane.b32.xlu0 %v755, 127
        %v893 = vpop.permute.xlu0 %892
        %894 = vrot.lane.b32.xlu0 %v756, 127
        %v895 = vpop.permute.xlu0 %894
        %896 = vrot.lane.b32.xlu0 %v757, 127
        %v897 = vpop.permute.xlu0 %896
        %898 = vrot.lane.b32.xlu0 %v758, 127
        %v899 = vpop.permute.xlu0 %898
        %900 = vrot.lane.b32.xlu0 %v759, 127
        %v901 = vpop.permute.xlu0 %900
        %902 = vrot.lane.b32.xlu0 %v760, 127
        %v903 = vpop.permute.xlu0 %902
        %904 = vrot.lane.b32.xlu0 %v761, 127
        %v905 = vpop.permute.xlu0 %904
        %v906 = vsel %vm164, %v891, %v893
        %v907 = vsel %vm164, %v895, %v897
        %v908 = vsel %vm164, %v899, %v901
        %v909 = vsel %vm164, %v903, %v905
        %v914 = vmin.f32 %v838, %v906
        %v915 = vmin.f32 %v839, %v907
        %v916 = vmin.f32 %v840, %v908
        %v917 = vmin.f32 %v841, %v909
        %v918 = vmax.f32 %v838, %v906
        %v919 = vmax.f32 %v839, %v907
        %v920 = vmax.f32 %v840, %v908
        %v921 = vmax.f32 %v841, %v909
        %v930 = vrot.slane %v794, 1
        %v931 = vrot.slane %v834, 1
        %v932 = vsel %vm413, %v930, %v931
        %v933 = vrot.slane %v795, 1
        %v934 = vrot.slane %v835, 1
        %v935 = vsel %vm413, %v933, %v934
        %v936 = vrot.slane %v796, 1
        %v937 = vrot.slane %v836, 1
        %v938 = vsel %vm413, %v936, %v937
        %v939 = vrot.slane %v797, 1
        %v940 = vrot.slane %v837, 1
        %v941 = vsel %vm413, %v939, %v940
        %v946 = vmax.f32 %v794, %v932
        %v947 = vmax.f32 %v795, %v935
        %v948 = vmax.f32 %v796, %v938
        %v949 = vmax.f32 %v797, %v941
        %v958 = vrot.slane %v878, 1
        %v959 = vrot.slane %v918, 1
        %v960 = vsel %vm413, %v958, %v959
        %v961 = vrot.slane %v879, 1
        %v962 = vrot.slane %v919, 1
        %v963 = vsel %vm413, %v961, %v962
        %v964 = vrot.slane %v880, 1
        %v965 = vrot.slane %v920, 1
        %v966 = vsel %vm413, %v964, %v965
        %v967 = vrot.slane %v881, 1
        %v968 = vrot.slane %v921, 1
        %v969 = vsel %vm413, %v967, %v968
        %v978 = vmin.f32 %v878, %v960
        %v979 = vmin.f32 %v918, %v959
        %v980 = vmin.f32 %v879, %v963
        %v981 = vmin.f32 %v919, %v962
        %v982 = vmin.f32 %v880, %v966
        %v983 = vmin.f32 %v920, %v965
        %v984 = vmin.f32 %v881, %v969
        %v985 = vmin.f32 %v921, %v968
        %v994 = vrot.slane %v874, 1
        %v995 = vrot.slane %v914, 1
        %v996 = vsel %vm413, %v994, %v995
        %v997 = vrot.slane %v875, 1
        %v998 = vrot.slane %v915, 1
        %v999 = vsel %vm413, %v997, %v998
        %v1000 = vrot.slane %v876, 1
        %v1001 = vrot.slane %v916, 1
        %v1002 = vsel %vm413, %v1000, %v1001
        %v1003 = vrot.slane %v877, 1
        %v1004 = vrot.slane %v917, 1
        %v1005 = vsel %vm413, %v1003, %v1004
        %v1014 = vmin.f32 %v874, %v996
        %v1015 = vmin.f32 %v914, %v995
        %v1016 = vmin.f32 %v875, %v999
        %v1017 = vmin.f32 %v915, %v998
        %v1018 = vmin.f32 %v876, %v1002
        %v1019 = vmin.f32 %v916, %v1001
        %v1020 = vmin.f32 %v877, %v1005
        %v1021 = vmin.f32 %v917, %v1004
        %v1022 = vmax.f32 %v874, %v996
        %v1023 = vmax.f32 %v914, %v995
        %v1024 = vmax.f32 %v875, %v999
        %v1025 = vmax.f32 %v915, %v998
        %v1026 = vmax.f32 %v876, %v1002
        %v1027 = vmax.f32 %v916, %v1001
        %v1028 = vmax.f32 %v877, %v1005
        %v1029 = vmax.f32 %v917, %v1004
        %v1030 = vrot.slane %v794, 2
        %v1031 = vrot.slane %v834, 2
        %v1032 = vsel %vm514, %v1030, %v1031
        %v1033 = vrot.slane %v795, 2
        %v1034 = vrot.slane %v835, 2
        %v1035 = vsel %vm514, %v1033, %v1034
        %v1036 = vrot.slane %v796, 2
        %v1037 = vrot.slane %v836, 2
        %v1038 = vsel %vm514, %v1036, %v1037
        %v1039 = vrot.slane %v797, 2
        %v1040 = vrot.slane %v837, 2
        %v1041 = vsel %vm514, %v1039, %v1040
        %v1046 = vmax.f32 %v946, %v1032
        %v1047 = vmax.f32 %v947, %v1035
        %v1048 = vmax.f32 %v948, %v1038
        %v1049 = vmax.f32 %v949, %v1041
        %v1058 = vrot.slane %v1014, 1
        %v1059 = vrot.slane %v1015, 1
        %v1060 = vsel %vm413, %v1058, %v1059
        %v1061 = vrot.slane %v1016, 1
        %v1062 = vrot.slane %v1017, 1
        %v1063 = vsel %vm413, %v1061, %v1062
        %v1064 = vrot.slane %v1018, 1
        %v1065 = vrot.slane %v1019, 1
        %v1066 = vsel %vm413, %v1064, %v1065
        %v1067 = vrot.slane %v1020, 1
        %v1068 = vrot.slane %v1021, 1
        %v1069 = vsel %vm413, %v1067, %v1068
        %v1074 = vmax.f32 %v874, %v1060
        %v1075 = vmax.f32 %v875, %v1063
        %v1076 = vmax.f32 %v876, %v1066
        %v1077 = vmax.f32 %v877, %v1069
        %v1086 = vrot.slane %v978, 1
        %v1087 = vrot.slane %v979, 1
        %v1088 = vsel %vm413, %v1086, %v1087
        %v1089 = vrot.slane %v980, 1
        %v1090 = vrot.slane %v981, 1
        %v1091 = vsel %vm413, %v1089, %v1090
        %v1092 = vrot.slane %v982, 1
        %v1093 = vrot.slane %v983, 1
        %v1094 = vsel %vm413, %v1092, %v1093
        %v1095 = vrot.slane %v984, 1
        %v1096 = vrot.slane %v985, 1
        %v1097 = vsel %vm413, %v1095, %v1096
        %v1102 = vmin.f32 %v878, %v1088
        %v1103 = vmin.f32 %v879, %v1091
        %v1104 = vmin.f32 %v880, %v1094
        %v1105 = vmin.f32 %v881, %v1097
        %v1114 = vrot.slane %v1022, 1
        %v1115 = vrot.slane %v1023, 1
        %v1116 = vsel %vm413, %v1114, %v1115
        %v1117 = vrot.slane %v1024, 1
        %v1118 = vrot.slane %v1025, 1
        %v1119 = vsel %vm413, %v1117, %v1118
        %v1120 = vrot.slane %v1026, 1
        %v1121 = vrot.slane %v1027, 1
        %v1122 = vsel %vm413, %v1120, %v1121
        %v1123 = vrot.slane %v1028, 1
        %v1124 = vrot.slane %v1029, 1
        %v1125 = vsel %vm413, %v1123, %v1124
        %v1130 = vmin.f32 %v1074, %v1116
        %v1131 = vmin.f32 %v1075, %v1119
        %v1132 = vmin.f32 %v1076, %v1122
        %v1133 = vmin.f32 %v1077, %v1125
        %v1134 = vmin.f32 %v1130, %v1102
        %v1135 = vmin.f32 %v1131, %v1103
        %v1136 = vmin.f32 %v1132, %v1104
        %v1137 = vmin.f32 %v1133, %v1105
        %v1138 = vmax.f32 %v1130, %v1102
        %v1139 = vmax.f32 %v1131, %v1103
        %v1140 = vmax.f32 %v1132, %v1104
        %v1141 = vmax.f32 %v1133, %v1105
        %v1142 = vmax.f32 %v1046, %v1134
        %v1143 = vmax.f32 %v1047, %v1135
        %v1144 = vmax.f32 %v1048, %v1136
        %v1145 = vmax.f32 %v1049, %v1137
        %v1146 = vmin.f32 %v1142, %v1138
        %v1147 = vmin.f32 %v1143, %v1139
        %v1148 = vmin.f32 %v1144, %v1140
        %v1149 = vmin.f32 %v1145, %v1141
        %s1150 = scalar_lea.vmem %s112, 8 [#allocation2]
        %1151 = vst [vmem:[%s1150] sm:$0xff] %v1146
        %1152 = vst [vmem:[%s1150 + $0x10] sm:$0xff] %v1147
        %1153 = vst [vmem:[%s1150 + $0x20] sm:$0xff] %v1148
        %1154 = vst [vmem:[%s1150 + $0x30] sm:$0xff] %v1149
        %s1155 = sand.u32 %s49, 1
        %s1156 = scalar_lea.sflag [#allocation3], %s1155
        %s1157 = sand.u32 %s49, 1
        %s1158 = smul.addr %s1157, 64
        %s1159 = scalar_lea.vmem [#allocation2], %s1158
        // Predicated region
        $region25: #{tpu_custom_call.1} parent=23 // pred_check
          %p1160 = pneg %p59
        $region26: #{tpu_custom_call.1} parent=23 // pred_check_branch
          %1162 = sbr.rel (%p1160) target = $region28
        $region27: #{tpu_custom_call.1} parent=23 // pred_region
          %s1163 = smul.u32 4, %s15
          %s1165 = ssub.s32 1024, 1024
          %1166 = vsyncadd %s1156, %s1165
          %s1167 = smul.addr %s1163, 2
          %s1168 = smul.addr %s1167, 128
          %s1169 = scalar_lea.hbm %s1, %s1168
          %s1170 = sshll.u32 %s1159, 4
          %s1171 = int_to_ptr.vmem [resolvable:$true] %s1170
          %1176 = dma.vmem_to_hbm [thread:$0]  %s1171, 1024, %s1169, %s1156, 128, 128, 8
        $region28: #{tpu_custom_call.1} parent=23 // pred_fallthru
          _
      $region24: #{tpu_custom_call.1} parent=5 // pred_fallthru
        _
      %p1177 = scmp.le.s32.totalorder 2, %s10
      // Predicated region
      $region29: #{tpu_custom_call.1} parent=5 // pred_check
        %p1178 = pneg %p1177
      $region30: #{tpu_custom_call.1} parent=5 // pred_check_branch
        %1180 = sbr.rel (%p1178) target = $region32
      $region31: #{tpu_custom_call.1} parent=5 // pred_region
        %s1181 = ssub.s32 %s10, 2
        // Predicated region
        $region33: #{tpu_custom_call.1} parent=31 // pred_check
          %p1182 = pneg %p65
        $region34: #{tpu_custom_call.1} parent=31 // pred_check_branch
          %1184 = sbr.rel (%p1182) target = $region36
        $region35: #{tpu_custom_call.1} parent=31 // pred_region
          %s1185 = sand.u32 %s50, 1
          %s1186 = scalar_lea.sflag [#allocation3], %s1185
          %s1187 = sand.u32 %s50, 1
          %s1188 = smul.addr %s1187, 64
          %s1189 = scalar_lea.vmem [#allocation2], %s1188
          %1190 = dma.done %s1186, 1024
        $region36: #{tpu_custom_call.1} parent=31 // pred_fallthru
          _
      $region32: #{tpu_custom_call.1} parent=5 // pred_fallthru
        _
    $region6: #{tpu_custom_call.1} parent=1 // loop_footer
      %s14 = sadd.s32 1, %s10
    $region7: #{tpu_custom_call.1} parent=1 // loop_footer_branch
      %9 = sbr.rel target = $region3
    $region8: #{tpu_custom_call.1} parent=1 // loop_exit
      _
    %1191 = vsyncpa [#allocation3], 1
    %s1192 = scalar_lea.sflag [#allocation3], 1
    %1193 = vsyncpa %s1192, 1

</llo_original>
